<compile_context>
chip_gen: v5e
topology: v5e:2x2
jax: 0.10.0
libtpu: 0.0.40
codegen_flags: <defaults>
</compile_context>

<pallas_src>
import functools

import jax
import jax.numpy as jnp
from jax.experimental import pallas as pl
from jax.experimental.pallas import tpu as pltpu


_LANES = 128
_MIN_PALLAS_ELEMS = 8192      # below this a fused XLA elementwise+reduce wins


def _cdiv(a, b):
    return -(-a // b)


def _contrastive_loss_kernel(dist_ref, label_ref, out_ref, *, margin, wg, wi,
                             tm, nb_per_chunk, nb_total, valid_rows,
                             guard_blocks, mask_rows):
    """One (tm, 128) tile -> per-lane partial sums into a (1, 1, 128) block.

    dist_ref:  (tm, 128) f32      pairwise distances
    label_ref: (tm, 128) i32/f32  nonzero = genuine pair
    out_ref:   (1, 1, 128) f32    per-chunk lane accumulator (resident across j)
    """
    j = pl.program_id(1)

    @pl.when(j == 0)
    def _init():
        out_ref[...] = jnp.zeros_like(out_ref)

    def _accumulate():
        d = dist_ref[...].astype(jnp.float32)
        genuine = label_ref[...] != 0
        hinge = jnp.maximum(jnp.float32(margin) - d, 0.0)
        # genuine -> d, imposter -> hinge ; wg/wi already fold weight * 0.5 / N
        t = jnp.where(genuine, d, hinge)
        w = jnp.where(genuine, jnp.float32(wg), jnp.float32(wi))
        contrib = w * (t * t)
        if mask_rows:
            # Ragged last block: rows past the logical array contain garbage
            # (Pallas edge blocks do not zero-fill) -> mask them out.
            blk = pl.program_id(0) * nb_per_chunk + j
            row = jax.lax.broadcasted_iota(jnp.int32, contrib.shape, 0)
            contrib = jnp.where(blk * tm + row < valid_rows, contrib, 0.0)
        # Sublane-only reduce; the cross-lane reduce happens once in the wrapper.
        out_ref[...] += jnp.sum(contrib, axis=0, keepdims=True)[None]

    if guard_blocks:
        # Odd block count split over 2 chunks: the last grid step of the last
        # chunk maps past the valid blocks (index_map clamps it); skip compute.
        blk = pl.program_id(0) * nb_per_chunk + j
        pl.when(blk < nb_total)(_accumulate)
    else:
        _accumulate()


def contrastive_loss(output, label, *, margin=1.0, weight=None,
                     block_rows=None, force_pallas=False):
    """Pallas-backed equivalent of netharn ContrastiveLoss.forward.

    output:  (N, 1) or (N,) distances (direct network output)
    label:   (N,) labels; nonzero = genuine, 0 = imposter
    weight:  optional (w_imposter, w_genuine) pair of Python numbers
    margin:  Python number

    margin / weight / N are baked into the kernel as Python constants: they
    must not be traced values, and each distinct N compiles a fresh kernel.
    """
    dist = jnp.squeeze(output)
    if dist.ndim == 0:
        dist = dist.reshape(1)
    n = int(dist.shape[0])
    n_div = int(label.shape[0])          # torch divides by label.size(0)

    if weight is None:
        w0 = w1 = 1.0
    else:
        w0, w1 = float(weight[0]), float(weight[1])
    margin = float(margin)

    # Keep the streamed dtypes at 4 bytes so row blocks only need 8-sublane
    # granularity.  f32 dist / i32 (or f32) labels pass through with no copy;
    # exotic dtypes (bf16 / int8 / bool / x64) pay one cast.
    if dist.dtype != jnp.float32:
        dist = dist.astype(jnp.float32)
    lbl = label
    if lbl.dtype.itemsize != 4:
        if lbl.dtype == jnp.bool_ or jnp.issubdtype(lbl.dtype, jnp.integer):
            lbl = lbl.astype(jnp.int32)
        else:
            lbl = lbl.astype(jnp.float32)

    scale = 0.5 / float(n_div)

    # ---- small-batch fast path: XLA's fused elementwise+reduce is optimal ---
    if n < _MIN_PALLAS_ELEMS and not force_pallas:
        genuine = lbl != 0
        hinge = jnp.maximum(margin - dist, 0.0)
        t = jnp.where(genuine, dist, hinge)
        w = jnp.where(genuine, w1, w0)
        return jnp.sum(w * (t * t)) * scale

    wg = w1 * scale                    # genuine  weight * 0.5 / N
    wi = w0 * scale                    # imposter weight * 0.5 / N

    # ---- lane-dense (rows, 128) view ----------------------------------------
    rows_needed = _cdiv(n, _LANES)
    valid_rows = max(rows_needed, 8)               # at least one (8, 128) tile
    padded = valid_rows * _LANES
    if padded == n:
        # zero-copy: row-major (N,) -> (N/128, 128) is a pure bitcast
        dist2d = dist.reshape(valid_rows, _LANES)
        lbl2d = lbl.reshape(valid_rows, _LANES)
    else:
        # ragged tail: pad only up to the next 128-lane boundary, with values
        # that contribute exactly 0 (dist=0, label=genuine -> wg * 0^2).
        pad = padded - n
        dist2d = jnp.pad(dist, (0, pad)).reshape(valid_rows, _LANES)
        lbl2d = jnp.pad(lbl, (0, pad), constant_values=1).reshape(valid_rows, _LANES)

    # ---- tiling / chunking ----------------------------------------------------
    if block_rows is None:
        block_rows = 2048 if valid_rows >= 8192 else 1024
    tm = max(8, min((int(block_rows) // 8) * 8, (valid_rows // 8) * 8))
    nb_total = _cdiv(valid_rows, tm)
    # Two "parallel" chunks (one per TensorCore on dual-TC parts) only when each
    # chunk still gets >= 2 blocks, so input double-buffering stays effective.
    n_chunks = 2 if nb_total >= 4 else 1
    nb_per_chunk = _cdiv(nb_total, n_chunks)
    guard_blocks = (n_chunks * nb_per_chunk) != nb_total
    mask_rows = (nb_total * tm) != valid_rows

    if guard_blocks:
        def row_block(i, j):
            # Clamp the single overshooting step of the last chunk onto the
            # last valid block; its compute is skipped inside the kernel.
            return (jnp.minimum(i * nb_per_chunk + j, nb_total - 1), 0)
    else:
        def row_block(i, j):
            return (i * nb_per_chunk + j, 0)

    kernel = functools.partial(
        _contrastive_loss_kernel, margin=margin, wg=wg, wi=wi, tm=tm,
        nb_per_chunk=nb_per_chunk, nb_total=nb_total, valid_rows=valid_rows,
        guard_blocks=guard_blocks, mask_rows=mask_rows)

    partials = pl.pallas_call(
        kernel,
        out_shape=jax.ShapeDtypeStruct((n_chunks, 1, _LANES), jnp.float32),
        grid_spec=pltpu.PrefetchScalarGridSpec(
            num_scalar_prefetch=0,
            grid=(n_chunks, nb_per_chunk),
            in_specs=[
                pl.BlockSpec((tm, _LANES), row_block),
                pl.BlockSpec((tm, _LANES), row_block),
            ],
            out_specs=pl.BlockSpec((1, 1, _LANES), lambda i, j: (i, 0, 0)),
        ),
        compiler_params=pltpu.CompilerParams(
            dimension_semantics=("parallel", "arbitrary")),
    )(dist2d, lbl2d)

    # cross-lane / cross-chunk reduce (n_chunks * 128 values -> scalar)
    return jnp.sum(partials)


def _reference_loss(output, label, *, margin=1.0, weight=None):
    dist = jnp.squeeze(output).astype(jnp.float32)
    y = label.astype(jnp.float32)
    hinge = jnp.maximum(margin - dist, 0.0)
    li = (1.0 - y) * hinge ** 2
    lg = y * dist ** 2
    if weight is not None:
        li = li * weight[0]
        lg = lg * weight[1]
    return jnp.sum(lg + li) / 2.0 / label.shape[0]


if __name__ == "__main__":
    key = jax.random.PRNGKey(0)
    keys = jax.random.split(key, 8)

    margin = 1.0
    weight = (0.75, 1.25)

    def _make(kd, kl, n):
        out = jax.random.uniform(kd, (n, 1), dtype=jnp.float32) * 2.0
        lab = (jax.random.uniform(kl, (n,)) > 0.5).astype(jnp.int32)
        return out, lab

    def _check(got, out, lab, **kw):
        ref = _reference_loss(out, lab, **kw)
        assert jnp.allclose(got, ref, rtol=1e-5, atol=1e-6), (got, ref)

    # 1) small batch (typical module use): pure-jnp fast path
    out1, lab1 = _make(keys[0], keys[1], 8)
    loss = jax.block_until_ready(
        contrastive_loss(out1, lab1, margin=margin, weight=weight))
    _check(loss, out1, lab1, margin=margin, weight=weight)

    # 2) same tiny batch forced through the Pallas kernel
    #    (exercises the 128-lane tail pad + a single (8,128) tile)
    loss = jax.block_until_ready(
        contrastive_loss(out1, lab1, margin=margin, weight=weight,
                         force_pallas=True))
    _check(loss, out1, lab1, margin=margin, weight=weight)

    # 3) ragged N (not a multiple of 128): tail-only pad + edge-row masking,
    #    2 parallel chunks x 2 blocks
    out2, lab2 = _make(keys[2], keys[3], 30000)
    loss = jax.block_until_ready(
        contrastive_loss(out2, lab2, margin=margin, weight=weight,
                         block_rows=64))
    _check(loss, out2, lab2, margin=margin, weight=weight)

    # 4) N % 128 == 0: zero-copy reshape path, even block split, no masking
    out3, lab3 = _make(keys[4], keys[5], 131072)
    loss = jax.block_until_ready(
        contrastive_loss(out3, lab3, margin=margin, weight=weight,
                         block_rows=256))
    _check(loss, out3, lab3, margin=margin, weight=weight)

    # 5) odd block count over 2 chunks: clamped index_map + pl.when block guard;
    #    also covers the no-weight / non-default-margin path
    out4, lab4 = _make(keys[6], keys[7], 40960)
    loss = jax.block_until_ready(
        contrastive_loss(out4, lab4, margin=10.0, block_rows=64))
    _check(loss, out4, lab4, margin=10.0)

    print("KERNEL_OK")
</pallas_src>

<mosaic_0001>
module attributes {stable_mosaic.version = 11 : i64} {
  func.func @_contrastive_loss_kernel(%arg0: i32, %arg1: i32, %arg2: memref<8x128xf32, #tpu.memory_space<vmem>>, %arg3: memref<8x128xi32, #tpu.memory_space<vmem>>, %arg4: memref<1x1x128xf32, #tpu.memory_space<vmem>>) attributes {dimension_semantics = [#tpu.dimension_semantics<parallel>, #tpu.dimension_semantics<arbitrary>], iteration_bounds = array<i64: 1, 1>, scalar_prefetch = 0 : i64, scratch_operands = 0 : i64, tpu.core_type = #tpu.core_type<tc>, window_params = [{transform_indices = @transform_0, window_bounds = array<i64: 8, 128>}, {transform_indices = @transform_1, window_bounds = array<i64: 8, 128>}, {transform_indices = @transform_2, window_bounds = array<i64: 1, 1, 128>}]} {
    %c0_i32 = arith.constant 0 : i32
    %0 = arith.cmpi eq, %arg1, %c0_i32 : i32
    %1 = arith.extui %0 : i1 to i32
    %c0_i32_0 = arith.constant 0 : i32
    %2 = arith.cmpi ne, %1, %c0_i32_0 : i32
    scf.if %2 {
      %cst_15 = arith.constant 0.000000e+00 : f32
      %23 = vector.broadcast %cst_15 : f32 to vector<1x1x128xf32>
      %c0_16 = arith.constant 0 : index
      %c0_17 = arith.constant 0 : index
      %c0_18 = arith.constant 0 : index
      %24 = vector.load %arg4[%c0_16, %c0_17, %c0_18] : memref<1x1x128xf32, #tpu.memory_space<vmem>>, vector<1x1x128xf32>
      tpu.vector_store %arg4[%c0_16, %c0_17, %c0_18], %23 {strides = array<i32>} : memref<1x1x128xf32, #tpu.memory_space<vmem>>, vector<1x1x128xf32>,
    } else {
    }
    %c0 = arith.constant 0 : index
    %c0_1 = arith.constant 0 : index
    %3 = vector.load %arg2[%c0, %c0_1] : memref<8x128xf32, #tpu.memory_space<vmem>>, vector<8x128xf32>
    %c0_2 = arith.constant 0 : index
    %c0_3 = arith.constant 0 : index
    %4 = vector.load %arg3[%c0_2, %c0_3] : memref<8x128xi32, #tpu.memory_space<vmem>>, vector<8x128xi32>
    %c0_i32_4 = arith.constant 0 : i32
    %5 = vector.broadcast %c0_i32_4 : i32 to vector<8x128xi32>
    %6 = arith.cmpi ne, %4, %5 : vector<8x128xi32>
    %cst = arith.constant 1.000000e+00 : f32
    %7 = vector.broadcast %cst : f32 to vector<8x128xf32>
    %8 = arith.subf %7, %3 : vector<8x128xf32>
    %cst_5 = arith.constant 0.000000e+00 : f32
    %9 = vector.broadcast %cst_5 : f32 to vector<8x128xf32>
    %10 = arith.maximumf %8, %9 : vector<8x128xf32>
    %11 = arith.select %6, %3, %10 : vector<8x128xi1>, vector<8x128xf32>
    %cst_6 = arith.constant 7.812500e-02 : f32
    %cst_7 = arith.constant 4.687500e-02 : f32
    %12 = vector.broadcast %cst_6 : f32 to vector<8x128xf32>
    %13 = vector.broadcast %cst_7 : f32 to vector<8x128xf32>
    %14 = arith.select %6, %12, %13 : vector<8x128xi1>, vector<8x128xf32>
    %15 = arith.mulf %11, %11 : vector<8x128xf32>
    %16 = arith.mulf %14, %15 : vector<8x128xf32>
    %c0_8 = arith.constant 0 : index
    %c0_9 = arith.constant 0 : index
    %c0_10 = arith.constant 0 : index
    %17 = vector.load %arg4[%c0_8, %c0_9, %c0_10] : memref<1x1x128xf32, #tpu.memory_space<vmem>>, vector<1x1x128xf32>
    %cst_11 = arith.constant dense<0.000000e+00> : vector<128xf32>
    %18 = vector.multi_reduction <add>, %16, %cst_11 [0] : vector<8x128xf32> to vector<128xf32>
    %19 = vector.shape_cast %18 : vector<128xf32> to vector<1x128xf32>
    %20 = vector.shape_cast %19 : vector<1x128xf32> to vector<1x1x128xf32>
    %21 = arith.addf %17, %20 : vector<1x1x128xf32>
    %c0_12 = arith.constant 0 : index
    %c0_13 = arith.constant 0 : index
    %c0_14 = arith.constant 0 : index
    %22 = vector.load %arg4[%c0_12, %c0_13, %c0_14] : memref<1x1x128xf32, #tpu.memory_space<vmem>>, vector<1x1x128xf32>
    tpu.vector_store %arg4[%c0_12, %c0_13, %c0_14], %21 {strides = array<i32>} : memref<1x1x128xf32, #tpu.memory_space<vmem>>, vector<1x1x128xf32>,
    return
  }
  func.func @transform_0(%arg0: i32, %arg1: i32) -> (i32, i32) {
    %c1_i32 = arith.constant 1 : i32
    %0 = arith.muli %arg0, %c1_i32 : i32
    %1 = arith.addi %0, %arg1 : i32
    %c0_i32 = arith.constant 0 : i32
    %c0_i32_0 = arith.constant 0 : i32
    return %1, %c0_i32 : i32, i32
  }
  func.func @transform_1(%arg0: i32, %arg1: i32) -> (i32, i32) {
    %c1_i32 = arith.constant 1 : i32
    %0 = arith.muli %arg0, %c1_i32 : i32
    %1 = arith.addi %0, %arg1 : i32
    %c0_i32 = arith.constant 0 : i32
    %c0_i32_0 = arith.constant 0 : i32
    return %1, %c0_i32 : i32, i32
  }
  func.func @transform_2(%arg0: i32, %arg1: i32) -> (i32, i32, i32) {
    %c0_i32 = arith.constant 0 : i32
    %c0_i32_0 = arith.constant 0 : i32
    %c0_i32_1 = arith.constant 0 : i32
    return %arg0, %c0_i32, %c0_i32_0 : i32, i32, i32
  }
}

</mosaic_0001>

<llo_original>
// kernel: tpu_custom_call.1
$region0: #{tpu_custom_call.1}
  #allocation0 [shape = 'u32[]', space=smem, size = 0x4, offset = 0x4, fixed_abs, tag = 'smem constant byte address 0x4 - core index']
  #allocation1 [shape = 'u32[72,128]{1,0:T(1,128)}', space=vmem, size = 0x9000, scoped, tag = 'internal scratch']
  %s0 = inlined_call_operand.hbm [shape: f32[8,128], index: 0, kind: input, shape index: {}]
  %s1 = inlined_call_operand.hbm [shape: s32[8,128], index: 1, kind: input, shape index: {}]
  %s2 = inlined_call_operand.hbm [shape: f32[1,1,128], index: 2, kind: output, shape index: {}]
  %s3 = sld [smem:[#allocation0]]
  $region30: #{tpu_custom_call.1} parent=0
    _
  %s5 = ssub.s32 1, %s3
  %s6 = scalar_select 0, %s5, %s3
  $region1: #{tpu_custom_call.1} parent=0
    #allocation2 [shape = 'u8[4096]{0}', space=vmem, size = 0x1000, scoped, tag = 'input window, operand 0, single buffered']
    #allocation3 [shape = 's32[1]{0}', space=sflag, size = 0x4, scoped, tag = 'scoped memory for tpu_custom_call.1']
    #allocation4 [shape = 's32[1]{0}', space=sflag, size = 0x4, scoped, tag = 'scoped memory for tpu_custom_call.1']
    #allocation5 [shape = 'u8[4096]{0}', space=vmem, size = 0x1000, scoped, tag = 'input window, operand 1, single buffered']
    #allocation6 [shape = 's32[1]{0}', space=sflag, size = 0x4, scoped, tag = 'scoped memory for tpu_custom_call.1']
    #allocation7 [shape = 'u8[512]{0}', space=vmem, size = 0x400, scoped, tag = 'output window, operand 0, single buffered']
    %7 = vsyncpa [#allocation3], 0
    %8 = vsyncpa [#allocation6], 0
    %9 = vsyncpa [#allocation4], 0
    // Predicated region
    $region2: #{tpu_custom_call.1} parent=1 // pred_check
      _
    $region3: #{tpu_custom_call.1} parent=1 // pred_check_branch
      %11 = sbr.rel (0) target = $region5
    $region4: #{tpu_custom_call.1} parent=1 // pred_region
      %s12 = sadd.s32 0, 0
      %14 = vsyncadd [#allocation3], 0
      %s15 = smul.addr %s12, 8
      %s16 = scalar_lea.hbm %s0, %s15
      %s18 = sshll.u32 %s16, 4
      %s19 = int_to_ptr.hbm [resolvable:$true] %s18
      %s20 = sshll.u32 [#allocation2], 4
      %s21 = int_to_ptr.vmem [resolvable:$true] %s20
      %23 = dma.hbm_to_vmem [thread:$0]  %s19, 128, %s21, [#allocation3]
    $region5: #{tpu_custom_call.1} parent=1 // pred_fallthru
      _
    // Predicated region
    $region6: #{tpu_custom_call.1} parent=1 // pred_check
      _
    $region7: #{tpu_custom_call.1} parent=1 // pred_check_branch
      %25 = sbr.rel (0) target = $region9
    $region8: #{tpu_custom_call.1} parent=1 // pred_region
      %s26 = sadd.s32 0, 0
      %28 = vsyncadd [#allocation6], 0
      %s29 = smul.addr %s26, 8
      %s30 = scalar_lea.hbm %s1, %s29
      %s32 = sshll.u32 %s30, 4
      %s33 = int_to_ptr.hbm [resolvable:$true] %s32
      %s34 = sshll.u32 [#allocation5], 4
      %s35 = int_to_ptr.vmem [resolvable:$true] %s34
      %37 = dma.hbm_to_vmem [thread:$0]  %s33, 128, %s35, [#allocation6]
    $region9: #{tpu_custom_call.1} parent=1 // pred_fallthru
      _
    // Predicated region
    $region10: #{tpu_custom_call.1} parent=1 // pred_check
      _
    $region11: #{tpu_custom_call.1} parent=1 // pred_check_branch
      %39 = sbr.rel (0) target = $region13
    $region12: #{tpu_custom_call.1} parent=1 // pred_region
      %41 = dma.done [#allocation3], 128
    $region13: #{tpu_custom_call.1} parent=1 // pred_fallthru
      _
    // Predicated region
    $region14: #{tpu_custom_call.1} parent=1 // pred_check
      _
    $region15: #{tpu_custom_call.1} parent=1 // pred_check_branch
      %43 = sbr.rel (0) target = $region17
    $region16: #{tpu_custom_call.1} parent=1 // pred_region
      %45 = dma.done [#allocation6], 128
    $region17: #{tpu_custom_call.1} parent=1 // pred_fallthru
      _
    %s46 = sadd.s32 0, 0
    %s47 = sadd.s32 0, 0
    %p48 = scmp.eq.s32.totalorder 0, 0
    // Predicated region
    $region18: #{tpu_custom_call.1} parent=1 // pred_check
      %p49 = pneg %p48
    $region19: #{tpu_custom_call.1} parent=1 // pred_check_branch
      %51 = sbr.rel (%p49) target = $region21
    $region20: #{tpu_custom_call.1} parent=1 // pred_region
      %52 = vst [vmem:[#allocation7] sm:$0x1] 0.0
    $region21: #{tpu_custom_call.1} parent=1 // pred_fallthru
      _
    %v53 = vld [vmem:[#allocation2] sm:$0xff]
    %v54 = vld [vmem:[#allocation5] sm:$0xff]
    %vm55 = vcmp.ne.s32.totalorder %v54, 0
    %v56 = vsub.f32 1.0, %v53
    %v57 = vmax.f32 %v56, 0.0
    %v58 = vsel %vm55, %v53, %v57
    %v59 = vsel %vm55, 0.078125, 0.046875
    %v60 = vmul.f32 %v58, %v58
    %v61 = vmul.f32 %v59, %v60
    %v62 = vld [vmem:[#allocation7] sm:$0x1]
    %v63 = vrot.slane %v61, 4
    %v64 = vadd.f32 %v61, %v63
    %v65 = vrot.slane %v64, 2
    %v66 = vadd.f32 %v64, %v65
    %v67 = vrot.slane %v66, 1
    %v68 = vadd.f32 %v66, %v67
    %v69 = vadd.f32 %v62, %v68
    %70 = vst [vmem:[#allocation7] sm:$0x1] %v69
    // Predicated region
    $region22: #{tpu_custom_call.1} parent=1 // pred_check
      _
    $region23: #{tpu_custom_call.1} parent=1 // pred_check_branch
      %72 = sbr.rel (0) target = $region25
    $region24: #{tpu_custom_call.1} parent=1 // pred_region
      %74 = vsyncadd [#allocation4], 0
      %s76 = sshll.u32 [#allocation7], 4
      %s77 = int_to_ptr.vmem [resolvable:$true] %s76
      %s78 = sshll.u32 %s2, 4
      %s79 = int_to_ptr.hbm [resolvable:$true] %s78
      %81 = dma.vmem_to_hbm [thread:$0]  %s77, 16, %s79, [#allocation4]
    $region25: #{tpu_custom_call.1} parent=1 // pred_fallthru
      _
    // Predicated region
    $region26: #{tpu_custom_call.1} parent=1 // pred_check
      _
    $region27: #{tpu_custom_call.1} parent=1 // pred_check_branch
      %83 = sbr.rel (0) target = $region29
    $region28: #{tpu_custom_call.1} parent=1 // pred_region
      %85 = dma.done [#allocation4], 16
    $region29: #{tpu_custom_call.1} parent=1 // pred_fallthru
      _
    %86 = vsyncpa [#allocation3], 1
    %87 = vsyncpa [#allocation6], 1
    %88 = vsyncpa [#allocation4], 1

</llo_original>
